<compile_context>
chip_gen: v7x
topology: tpu7x:2x2x1
jax: 0.10.0
libtpu: 0.0.40
codegen_flags: <defaults>
</compile_context>

<pallas_src>
import functools
import types

import jax
import jax.numpy as jnp
from jax.experimental import pallas as pl
from jax.experimental.pallas import tpu as pltpu


def _round_up(x, m):
    return pl.cdiv(x, m) * m


def _sublane(dtype):
    # dtype-aware second-to-last-dim multiple: 8 (f32), 16 (bf16), 32 (int8/fp8)
    return max(8, 32 // jnp.dtype(dtype).itemsize)


def _default_vmem_limit_bytes():
    # Scoped-VMEM budget derived from the physical capacity of the current
    # generation (v5e/v6e: 128 MiB -> 96 MiB, v7x: 64 MiB -> 48 MiB), with
    # headroom left for Mosaic internal scratch / semaphores.
    try:
        phys = int(pltpu.get_tpu_info().vmem_capacity_bytes)
    except Exception:  # query unavailable -> be conservative (covers v7x)
        phys = 64 * 1024 * 1024
    return min(int(phys * 3 // 4), 100 * 1024 * 1024)


def _pick_tile(total, sublane, limit):
    """Largest multiple-of-`sublane` divisor of `total` that is <= `limit`.
    `total` must be a multiple of `sublane`; falls back to `sublane`."""
    q = total // sublane
    limit = max(int(limit), sublane)
    best = sublane
    d = 1
    while d * d <= q:
        if q % d == 0:
            for t in (d * sublane, (q // d) * sublane):
                if best < t <= limit:
                    best = t
        d += 1
    return best


# ---------------------------------------------------------------------------
# Masked average pooling kernels.
# Hidden stays on the lane axis; batch rows are tiled on the grid so the
# auto-pipeline overlaps HBM<->VMEM DMA with the VPU/XLU reduction, and
# "parallel" semantics let the row axis shard across TensorCores.
# ---------------------------------------------------------------------------
def _masked_avg1_kernel(x_ref, m_ref, o_ref):
    # x_ref: (TB, S, H); m_ref: (TB, S); o_ref: (TB, H)
    x = x_ref[...].astype(jnp.float32)
    m = m_ref[...].astype(jnp.float32)
    num = jnp.sum(x * m[:, :, None], axis=1)            # (TB, H)
    den = jnp.sum(m, axis=1, keepdims=True)              # (TB, 1)
    inv = pl.reciprocal(den, approx=True)                 # EUP slot (free-ish)
    inv = inv * (2.0 - den * inv)                          # Newton step -> ~f32 accurate
    o_ref[...] = (num * inv).astype(o_ref.dtype)


def _masked_avg2_kernel(x1_ref, x2_ref, m_ref, o_ref):
    # Fused mean of two layers: ((x1 + x2)/2 * m).sum(1) / m.sum(1);
    # the /2 is folded into the reciprocal.
    x = x1_ref[...].astype(jnp.float32) + x2_ref[...].astype(jnp.float32)
    m = m_ref[...].astype(jnp.float32)
    num = jnp.sum(x * m[:, :, None], axis=1)
    den = jnp.sum(m, axis=1, keepdims=True)
    inv = pl.reciprocal(den, approx=True)
    inv = inv * (2.0 - den * inv)
    o_ref[...] = (num * (0.5 * inv)).astype(o_ref.dtype)


def masked_avg_pool(xs, attention_mask, *, tb=None, vmem_limit_bytes=None):
    """xs: tuple of 1 or 2 arrays (B, S, H); attention_mask: (B, S) -> (B, H).

    `tb` (optional) is an upper bound on rows per grid step; the actual tile is
    derived from the VMEM budget and snapped to a sublane-multiple divisor of
    the (lightly) padded batch so no further activation padding is needed.
    """
    xs = tuple(xs)
    assert len(xs) in (1, 2)
    B, S, H = xs[0].shape
    dtype = xs[0].dtype
    itemsize = jnp.dtype(dtype).itemsize
    if vmem_limit_bytes is None:
        vmem_limit_bytes = _default_vmem_limit_bytes()

    sub = _sublane(dtype)
    Bp = _round_up(B, sub)
    mask2 = attention_mask.astype(dtype)
    if Bp != B:
        # <= sublane-1 extra rows (zero whenever B is already sublane-aligned);
        # padded mask rows are ones so padded rows never divide by zero.
        pad = Bp - B
        xs = tuple(jnp.pad(x, ((0, pad), (0, 0), (0, 0))) for x in xs)
        mask2 = jnp.pad(mask2, ((0, pad), (0, 0)), constant_values=1)

    # Rows per grid step sized to the VMEM budget (x2 for double buffering),
    # capped so the grid has >=2 steps when possible (v7x has 2 TensorCores),
    # then snapped to the largest sublane-multiple divisor of Bp.
    per_row_bytes = (len(xs) * S * H + _round_up(S, 128) + _round_up(H, 128)) * itemsize
    tb_budget = int(vmem_limit_bytes * 0.9) // (2 * per_row_bytes)
    limit = tb_budget if tb is None else min(tb_budget, int(tb))
    if Bp // sub >= 2:
        limit = min(limit, Bp // 2)
    tb = _pick_tile(Bp, sub, limit)
    # TODO(synk): if S*H per row is so large that even `sub` rows exceed the
    # VMEM budget (very long sequences on v7x), add an 'arbitrary' sequence
    # grid axis with small num/den VMEM accumulators instead of shrinking tb.

    kernel = _masked_avg1_kernel if len(xs) == 1 else _masked_avg2_kernel
    x_spec = pl.BlockSpec((tb, S, H), lambda i: (i, 0, 0))
    m_spec = pl.BlockSpec((tb, S), lambda i: (i, 0))

    out = pl.pallas_call(
        kernel,
        out_shape=jax.ShapeDtypeStruct((Bp, H), dtype),
        grid_spec=pltpu.PrefetchScalarGridSpec(
            num_scalar_prefetch=0,
            grid=(Bp // tb,),
            in_specs=[x_spec] * len(xs) + [m_spec],
            out_specs=pl.BlockSpec((tb, H), lambda i: (i, 0)),
        ),
        compiler_params=pltpu.CompilerParams(
            dimension_semantics=("parallel",),
            vmem_limit_bytes=int(vmem_limit_bytes),
        ),
        cost_estimate=pl.CostEstimate(
            flops=(2 * len(xs) + 1) * Bp * S * H,
            transcendentals=Bp,
            bytes_accessed=(len(xs) * Bp * S * H + Bp * S + Bp * H) * itemsize,
        ),
    )(*xs, mask2)
    return out[:B]


# ---------------------------------------------------------------------------
# Dense+tanh head (BERT/RoBERTa MLP pooler -> outputs.pooler_output):
#   y = tanh(x @ W^T + b), W stored [out, in] exactly as nn.Linear.
# W is transposed ONCE in the wrapper (small one-time HBM pass, amortized over
# all grid steps / calls) so the MXU sees a plain (Hin, TN) RHS with no
# per-step XLU transpose inside the kernel.
# ---------------------------------------------------------------------------
def _dense_tanh_kernel(x_ref, wt_ref, b_ref, o_ref, *, compute_dtype):
    # x_ref: (TM, Hin); wt_ref: (Hin, TN); b_ref: (1, TN); o_ref: (TM, TN)
    x = x_ref[...].astype(compute_dtype)
    wt = wt_ref[...].astype(compute_dtype)
    y = jnp.dot(x, wt, preferred_element_type=jnp.float32)
    y = y + b_ref[...].astype(jnp.float32)
    o_ref[...] = jnp.tanh(y).astype(o_ref.dtype)


def dense_tanh_head(x, weight, bias, *, tm=None, tn=None, compute_dtype=None,
                    vmem_limit_bytes=None):
    """x: (..., Hin); weight: (Hout, Hin); bias: (Hout,). Returns (..., Hout)."""
    orig_shape = x.shape
    Hin = orig_shape[-1]
    Hout = weight.shape[0]
    x2 = x.reshape(-1, Hin)
    M = x2.shape[0]
    out_dtype = x2.dtype
    if compute_dtype is None:
        # Pass compute_dtype=jnp.bfloat16 to halve the weight read/VMEM
        # footprint and run the MXU at its bf16 peak (esp. v5e, where f32
        # matmul is multi-pass); accumulation stays f32 via
        # preferred_element_type.
        compute_dtype = x2.dtype
    if vmem_limit_bytes is None:
        vmem_limit_bytes = _default_vmem_limit_bytes()

    w_t = jnp.transpose(weight).astype(compute_dtype)     # (Hin, Hout), one-time
    b2 = bias.reshape(1, Hout).astype(jnp.float32)

    w_itemsize = jnp.dtype(compute_dtype).itemsize
    x_itemsize = jnp.dtype(x2.dtype).itemsize
    o_itemsize = jnp.dtype(out_dtype).itemsize
    budget = int(vmem_limit_bytes * 0.9)

    # ---- Hout (N) tiling: only when the weight cannot stay resident.
    # TODO(synk): pl.Buffered(1) on the constant-index W/b specs would halve
    # their VMEM footprint; the budget below conservatively assumes 2 buffers.
    if tn is None:
        if Hout <= 128 or 2 * Hin * Hout * w_itemsize <= budget // 2:
            tn = Hout
        else:
            tn = max(128, ((budget // 2) // (2 * Hin * w_itemsize)) // 128 * 128)
            tn = min(tn, _round_up(Hout, 128))
    Np = Hout if tn == Hout else _round_up(Hout, tn)
    if Np != Hout:
        w_t = jnp.pad(w_t, ((0, 0), (0, Np - Hout)))
        b2 = jnp.pad(b2, ((0, 0), (0, Np - Hout)))

    # ---- M tiling: fill the remaining budget, keep >=2 grid steps if possible.
    sub = _sublane(out_dtype)
    Mp = _round_up(M, sub)
    if Mp != M:
        x2 = jnp.pad(x2, ((0, Mp - M), (0, 0)))            # <= sublane-1 rows
    w_bytes = 2 * (Hin * tn * w_itemsize + _round_up(tn, 128) * 8 * 4)
    per_row = 2 * (Hin * x_itemsize + tn * o_itemsize)
    tm_budget = max(budget - w_bytes, 0) // per_row
    limit = tm_budget if tm is None else min(tm_budget, int(tm))
    if Mp // sub >= 2:
        limit = min(limit, Mp // 2)
    tm = _pick_tile(Mp, sub, limit)

    out = pl.pallas_call(
        functools.partial(_dense_tanh_kernel, compute_dtype=compute_dtype),
        out_shape=jax.ShapeDtypeStruct((Mp, Np), out_dtype),
        grid_spec=pltpu.PrefetchScalarGridSpec(
            num_scalar_prefetch=0,
            grid=(Mp // tm, Np // tn),
            in_specs=[
                pl.BlockSpec((tm, Hin), lambda i, j: (i, 0)),
                # Constant over i: the weight/bias tiles are not re-DMA'd per
                # row step (Pallas skips copies whose block index is unchanged).
                pl.BlockSpec((Hin, tn), lambda i, j: (0, j)),
                pl.BlockSpec((1, tn), lambda i, j: (0, j)),
            ],
            out_specs=pl.BlockSpec((tm, tn), lambda i, j: (i, j)),
        ),
        compiler_params=pltpu.CompilerParams(
            dimension_semantics=("parallel", "parallel"),
            vmem_limit_bytes=int(vmem_limit_bytes),
        ),
        cost_estimate=pl.CostEstimate(
            flops=2 * Mp * Hin * Np,
            transcendentals=Mp * Np,
            bytes_accessed=(Mp * Hin * x_itemsize + Mp * Np * o_itemsize
                            + Hin * Np * w_itemsize + Np * 4),
        ),
    )(x2, w_t, b2)
    out = out[:M, :Hout]
    return out.reshape(orig_shape[:-1] + (Hout,))


# ---------------------------------------------------------------------------
# Pooler.forward — mirrors the PyTorch reference semantics.
# ---------------------------------------------------------------------------
class Pooler:
    def __init__(self, pooler_type):
        self.pooler_type = pooler_type

    def __call__(self, attention_mask, outputs, args):
        last_hidden = outputs.last_hidden_state
        hidden_states = outputs.hidden_states

        if args.contrast_type == "add_hard_neg":
            n_sample = last_hidden.shape[0]
            n_naive = n_sample // 3 * 2
            naive_last_hidden = last_hidden[:n_naive]
            hard_last_hidden = last_hidden[n_naive:]
            attention_mask = attention_mask[:n_naive]
            if self.pooler_type == "avg":
                naive_pool = masked_avg_pool((naive_last_hidden,), attention_mask)
            elif self.pooler_type in ("cls_before_pooler", "cls"):
                naive_pool = naive_last_hidden[:, 0]            # pure slice
            else:
                raise NotImplementedError(self.pooler_type)
            hard_pool = hard_last_hidden[:, -args.n_tokens, :]   # pure slice
            return jnp.concatenate([naive_pool, hard_pool], axis=0)

        elif args.contrast_type == "naive":
            if self.pooler_type in ("cls_before_pooler", "cls"):
                return last_hidden[:, 0]
            elif self.pooler_type == "avg":
                return masked_avg_pool((last_hidden,), attention_mask)
            elif self.pooler_type == "avg_first_last":
                return masked_avg_pool((hidden_states[0], hidden_states[-1]), attention_mask)
            elif self.pooler_type == "avg_top2":
                return masked_avg_pool((hidden_states[-2], hidden_states[-1]), attention_mask)
            elif self.pooler_type == "last":
                return last_hidden[:, -1]
            else:
                raise NotImplementedError(self.pooler_type)
        else:
            raise NotImplementedError(args.contrast_type)


# ---------------------------------------------------------------------------
# Pure-JAX reference of the PyTorch module, for correctness checks.
# ---------------------------------------------------------------------------
def _ref_pooler(pooler_type, attention_mask, outputs, args):
    last_hidden = outputs.last_hidden_state
    hidden_states = outputs.hidden_states
    am = attention_mask

    def avg(x, m):
        return (x * m[..., None]).sum(1) / m.sum(-1)[..., None]

    if args.contrast_type == "add_hard_neg":
        n = last_hidden.shape[0]
        k = n // 3 * 2
        if pooler_type == "avg":
            naive_pool = avg(last_hidden[:k], am[:k])
        else:
            naive_pool = last_hidden[:k, 0]
        hard_pool = last_hidden[k:][:, -args.n_tokens, :]
        return jnp.concatenate([naive_pool, hard_pool], axis=0)
    if pooler_type in ("cls", "cls_before_pooler"):
        return last_hidden[:, 0]
    if pooler_type == "avg":
        return avg(last_hidden, am)
    if pooler_type == "avg_first_last":
        return avg((hidden_states[0] + hidden_states[-1]) / 2.0, am)
    if pooler_type == "avg_top2":
        return avg((hidden_states[-2] + hidden_states[-1]) / 2.0, am)
    if pooler_type == "last":
        return last_hidden[:, -1]
    raise NotImplementedError(pooler_type)


if __name__ == "__main__":
    key = jax.random.PRNGKey(0)
    k_h0, k_h1, k_last, k_w, k_b = jax.random.split(key, 5)

    batch, seq, hidden = 6, 8, 32   # batch divisible by 3 so add_hard_neg is exercised
    h_first = jax.random.normal(k_h0, (batch, seq, hidden), jnp.float32)
    h_mid = jax.random.normal(k_h1, (batch, seq, hidden), jnp.float32)
    last_hidden = jax.random.normal(k_last, (batch, seq, hidden), jnp.float32)
    hidden_states = (h_first, h_mid, last_hidden)   # hidden_states[-1] == last_hidden_state

    # Deterministic variable-length attention mask (every row has >= 1 valid token).
    lengths = jnp.array([3, 5, 8, 2, 6, 4], jnp.int32)
    attention_mask = (jnp.arange(seq)[None, :] < lengths[:, None]).astype(jnp.float32)

    # BERT-style MLP pooler head producing outputs.pooler_output (Pallas kernel).
    bound = 1.0 / (hidden ** 0.5)
    weight = jax.random.uniform(k_w, (hidden, hidden), jnp.float32, -bound, bound)
    bias = jax.random.uniform(k_b, (hidden,), jnp.float32, -bound, bound)
    pooler_output = dense_tanh_head(last_hidden[:, 0], weight, bias)
    jax.block_until_ready(pooler_output)

    outputs = types.SimpleNamespace(
        last_hidden_state=last_hidden,
        pooler_output=pooler_output,
        hidden_states=hidden_states,
    )

    # Dense+tanh kernel on a multi-step padded grid (M = 48 rows -> tm = 24, 2 steps).
    head_ref = jnp.tanh(last_hidden @ weight.T + bias)
    head_all = dense_tanh_head(last_hidden, weight, bias)
    jax.block_until_ready(head_all)
    assert head_all.shape == head_ref.shape
    assert jnp.allclose(head_all, head_ref, atol=1e-4, rtol=1e-4)
    assert jnp.allclose(
        pooler_output, jnp.tanh(last_hidden[:, 0] @ weight.T + bias),
        atol=1e-4, rtol=1e-4)

    # bf16-compute path (f32 accumulation) with appropriately looser tolerance.
    head_bf16 = dense_tanh_head(last_hidden, weight, bias, compute_dtype=jnp.bfloat16)
    jax.block_until_ready(head_bf16)
    assert jnp.allclose(head_bf16, head_ref, atol=3e-2, rtol=3e-2)

    # Exercise every Pooler branch and compare against the pure-JAX reference.
    cases = [
        ("naive", "cls"),
        ("naive", "cls_before_pooler"),
        ("naive", "avg"),
        ("naive", "avg_first_last"),
        ("naive", "avg_top2"),
        ("naive", "last"),
        ("add_hard_neg", "avg"),
        ("add_hard_neg", "cls"),
    ]
    for contrast_type, pooler_type in cases:
        args = types.SimpleNamespace(contrast_type=contrast_type, n_tokens=2)
        pooler = Pooler(pooler_type)
        y = pooler(attention_mask, outputs, args)
        jax.block_until_ready(y)
        ref = _ref_pooler(pooler_type, attention_mask, outputs, args)
        assert y.shape == ref.shape, (contrast_type, pooler_type, y.shape, ref.shape)
        assert jnp.allclose(y, ref, atol=1e-4, rtol=1e-4), (contrast_type, pooler_type)

    print("KERNEL_OK")
</pallas_src>

<mosaic_0001>
module attributes {stable_mosaic.version = 11 : i64} {
  func.func @_dense_tanh_kernel(%arg0: i32, %arg1: i32, %arg2: memref<8x32xf32, #tpu.memory_space<vmem>>, %arg3: memref<32x32xf32, #tpu.memory_space<vmem>>, %arg4: memref<1x32xf32, #tpu.memory_space<vmem>>, %arg5: memref<8x32xf32, #tpu.memory_space<vmem>>) attributes {dimension_semantics = [#tpu.dimension_semantics<parallel>, #tpu.dimension_semantics<parallel>], iteration_bounds = array<i64: 1, 1>, scalar_prefetch = 0 : i64, scratch_operands = 0 : i64, tpu.core_type = #tpu.core_type<tc>, window_params = [{transform_indices = @transform_0, window_bounds = array<i64: 8, 32>}, {transform_indices = @transform_1, window_bounds = array<i64: 32, 32>}, {transform_indices = @transform_2, window_bounds = array<i64: 1, 32>}, {transform_indices = @transform_3, window_bounds = array<i64: 8, 32>}]} {
    %c0 = arith.constant 0 : index
    %c0_0 = arith.constant 0 : index
    %0 = vector.load %arg2[%c0, %c0_0] : memref<8x32xf32, #tpu.memory_space<vmem>>, vector<8x32xf32>
    %c0_1 = arith.constant 0 : index
    %c0_2 = arith.constant 0 : index
    %1 = vector.load %arg3[%c0_1, %c0_2] : memref<32x32xf32, #tpu.memory_space<vmem>>, vector<32x32xf32>
    %cst = arith.constant dense<0.000000e+00> : vector<8x32xf32>
    %2 = tpu.matmul %0, %1, %cst {dimension_numbers = #tpu.dot_dimension_numbers<[1], [0], [0], [1], [0, 0, 1, 1], [], []>} : vector<8x32xf32>, vector<32x32xf32>, vector<8x32xf32> -> vector<8x32xf32>
    %c0_3 = arith.constant 0 : index
    %c0_4 = arith.constant 0 : index
    %3 = vector.load %arg4[%c0_3, %c0_4] : memref<1x32xf32, #tpu.memory_space<vmem>>, vector<1x32xf32>
    %4 = vector.broadcast %3 : vector<1x32xf32> to vector<8x32xf32>
    %5 = arith.addf %2, %4 : vector<8x32xf32>
    %6 = math.tanh %5 : vector<8x32xf32>
    %c0_5 = arith.constant 0 : index
    %c0_6 = arith.constant 0 : index
    %7 = vector.load %arg5[%c0_5, %c0_6] : memref<8x32xf32, #tpu.memory_space<vmem>>, vector<8x32xf32>
    tpu.vector_store %arg5[%c0_5, %c0_6], %6 {strides = array<i32>} : memref<8x32xf32, #tpu.memory_space<vmem>>, vector<8x32xf32>,
    return
  }
  func.func @transform_0(%arg0: i32, %arg1: i32) -> (i32, i32) {
    %c0_i32 = arith.constant 0 : i32
    %c0_i32_0 = arith.constant 0 : i32
    return %arg0, %c0_i32 : i32, i32
  }
  func.func @transform_1(%arg0: i32, %arg1: i32) -> (i32, i32) {
    %c0_i32 = arith.constant 0 : i32
    %c0_i32_0 = arith.constant 0 : i32
    return %c0_i32, %arg1 : i32, i32
  }
  func.func @transform_2(%arg0: i32, %arg1: i32) -> (i32, i32) {
    %c0_i32 = arith.constant 0 : i32
    %c0_i32_0 = arith.constant 0 : i32
    return %c0_i32, %arg1 : i32, i32
  }
  func.func @transform_3(%arg0: i32, %arg1: i32) -> (i32, i32) {
    %c0_i32 = arith.constant 0 : i32
    return %arg0, %arg1 : i32, i32
  }
}

</mosaic_0001>

<llo_original>
// kernel: tpu_custom_call.1
$region0: #{tpu_custom_call.1}
  #allocation0 [shape = 'u32[]', space=smem, size = 0x4, offset = 0x4, fixed_abs, tag = 'smem constant byte address 0x4 - core index']
  #allocation1 [shape = 'u32[144,128]{1,0:T(1,128)}', space=vmem, size = 0x12000, scoped, tag = 'internal scratch']
  %s0 = inlined_call_operand.hbm [shape: f32[8,32], index: 0, kind: input, shape index: {}]
  %s1 = inlined_call_operand.hbm [shape: f32[32,32], index: 1, kind: input, shape index: {}]
  %s2 = inlined_call_operand.vmem [shape: f32[1,32], index: 2, kind: input, shape index: {}]
  %s3 = inlined_call_operand.hbm [shape: f32[8,32], index: 3, kind: output, shape index: {}]
  %s4 = sld [smem:[#allocation0]]
  $region30: #{tpu_custom_call.1} parent=0
    _
  %s6 = ssub.s32 1, %s4
  %s7 = scalar_select 0, %s6, %s4
  $region1: #{tpu_custom_call.1} parent=0
    #allocation2 [shape = 'u8[4096]{0}', space=vmem, size = 0x1000, scoped, tag = 'input window, operand 0, single buffered']
    #allocation3 [shape = 's32[1]{0}', space=sflag, size = 0x4, scoped, tag = 'scoped memory for tpu_custom_call.1']
    #allocation4 [shape = 's32[1]{0}', space=sflag, size = 0x4, scoped, tag = 'scoped memory for tpu_custom_call.1']
    #allocation5 [shape = 'u8[16384]{0}', space=vmem, size = 0x4000, scoped, tag = 'input window, operand 1, single buffered']
    #allocation6 [shape = 's32[1]{0}', space=sflag, size = 0x4, scoped, tag = 'scoped memory for tpu_custom_call.1']
    #allocation7 [shape = 'u8[4096]{0}', space=vmem, size = 0x1000, scoped, tag = 'output window, operand 0, single buffered']
    %8 = vsyncpa [#allocation3], 0
    %9 = vsyncpa [#allocation6], 0
    %10 = vsyncpa [#allocation4], 0
    // Predicated region
    $region2: #{tpu_custom_call.1} parent=1 // pred_check
      _
    $region3: #{tpu_custom_call.1} parent=1 // pred_check_branch
      %12 = sbr.rel (0) target = $region5
    $region4: #{tpu_custom_call.1} parent=1 // pred_region
      %s14 = ssub.s32 128, 128
      %15 = vsyncadd [#allocation3], %s14
      %s17 = sshll.u32 [#allocation2], 4
      %s18 = int_to_ptr.vmem [resolvable:$true] %s17
      %20 = dma.hbm_to_vmem [thread:$0]  %s0, 128, %s18, [#allocation3]
    $region5: #{tpu_custom_call.1} parent=1 // pred_fallthru
      _
    // Predicated region
    $region6: #{tpu_custom_call.1} parent=1 // pred_check
      _
    $region7: #{tpu_custom_call.1} parent=1 // pred_check_branch
      %22 = sbr.rel (0) target = $region9
    $region8: #{tpu_custom_call.1} parent=1 // pred_region
      %s24 = ssub.s32 512, 512
      %25 = vsyncadd [#allocation6], %s24
      %s26 = sshll.u32 [#allocation5], 4
      %s27 = int_to_ptr.vmem [resolvable:$true] %s26
      %32 = dma.hbm_to_vmem [thread:$0]  %s1, 512, %s27, [#allocation6], 128, 128, 8
    $region9: #{tpu_custom_call.1} parent=1 // pred_fallthru
      _
    // Predicated region
    $region10: #{tpu_custom_call.1} parent=1 // pred_check
      _
    $region11: #{tpu_custom_call.1} parent=1 // pred_check_branch
      %34 = sbr.rel (0) target = $region13
    $region12: #{tpu_custom_call.1} parent=1 // pred_region
      _
    $region13: #{tpu_custom_call.1} parent=1 // pred_fallthru
      _
    // Predicated region
    $region14: #{tpu_custom_call.1} parent=1 // pred_check
      _
    $region15: #{tpu_custom_call.1} parent=1 // pred_check_branch
      %36 = sbr.rel (0) target = $region17
    $region16: #{tpu_custom_call.1} parent=1 // pred_region
      %37 = dma.done [#allocation3], 128
    $region17: #{tpu_custom_call.1} parent=1 // pred_fallthru
      _
    // Predicated region
    $region18: #{tpu_custom_call.1} parent=1 // pred_check
      _
    $region19: #{tpu_custom_call.1} parent=1 // pred_check_branch
      %39 = sbr.rel (0) target = $region21
    $region20: #{tpu_custom_call.1} parent=1 // pred_region
      %40 = dma.done [#allocation6], 512
    $region21: #{tpu_custom_call.1} parent=1 // pred_fallthru
      _
    %v41 = vld [vmem:[#allocation2] sm:$0xff]
    %v42 = vld [vmem:[#allocation5] sm:$0xff]
    %v43 = vld [vmem:[#allocation5 + $0x8] sm:$0xff]
    %v44 = vld [vmem:[#allocation5 + $0x10] sm:$0xff]
    %v45 = vld [vmem:[#allocation5 + $0x18] sm:$0xff]
    %v46 = vld [vmem:[%s2] sm:$0x1]
    %v48 = vlaneseq
    %v49 = vshrl.u32 %v48, 7
    %v50 = vsub.s32 0, %v49
    %v51 = vrot.slane %v46, %v50
    %vm53 = vcmask 261120
    %v55 = vsel %vm53, %v41, 0
    %57 = vmatprep.subr.mxu0 0.0
    %58 = vmatpush1.msra.mxu0 %v42
    %59 = vmatprep.subr.mxu0 0.0
    %60 = vmatpush1.msra.mxu0 %v43
    %61 = vmatprep.subr.mxu0 0.0
    %62 = vmatpush1.msra.mxu0 %v44
    %63 = vmatprep.subr.mxu0 0.0
    %64 = vmatpush1.msra.mxu0 %v45
    %65 = vmatprep.subr.mxu0 0.0
    %66 = vmatpush1.msra.mxu0 0.0
    %67 = vmatprep.subr.mxu0 0.0
    %68 = vmatpush1.msra.mxu0 0.0
    %69 = vmatprep.subr.mxu0 0.0
    %70 = vmatpush1.msra.mxu0 0.0
    %71 = vmatprep.subr.mxu0 0.0
    %72 = vmatpush1.msra.mxu0 0.0
    %73 = vmatprep.subr.mxu0 0.0
    %74 = vmatpush1.msra.mxu0 0.0
    %75 = vmatprep.subr.mxu0 0.0
    %76 = vmatpush1.msra.mxu0 0.0
    %77 = vmatprep.subr.mxu0 0.0
    %78 = vmatpush1.msra.mxu0 0.0
    %79 = vmatprep.subr.mxu0 0.0
    %80 = vmatpush1.msra.mxu0 0.0
    %81 = vmatprep.subr.mxu0 0.0
    %82 = vmatpush1.msra.mxu0 0.0
    %83 = vmatprep.subr.mxu0 0.0
    %84 = vmatpush1.msra.mxu0 0.0
    %85 = vmatprep.subr.mxu0 0.0
    %86 = vmatpush1.msra.mxu0 0.0
    %87 = vmatprep.subr.mxu0 0.0
    %88 = vmatpush1.msra.mxu0 0.0
    %89 = vmatprep.subr.mxu0 0.0
    %90 = vmatpush1.msra.mxu0 0.0
    %91 = vmatprep.subr.mxu0 0.0
    %92 = vmatpush1.msra.mxu0 0.0
    %93 = vmatprep.subr.mxu0 0.0
    %94 = vmatpush1.msra.mxu0 0.0
    %95 = vmatprep.subr.mxu0 0.0
    %96 = vmatpush1.msra.mxu0 0.0
    %97 = vmatprep.subr.mxu0 0.0
    %98 = vmatpush1.msra.mxu0 0.0
    %99 = vmatprep.subr.mxu0 0.0
    %100 = vmatpush1.msra.mxu0 0.0
    %101 = vmatprep.subr.mxu0 0.0
    %102 = vmatpush1.msra.mxu0 0.0
    %103 = vmatprep.subr.mxu0 0.0
    %104 = vmatpush1.msra.mxu0 0.0
    %105 = vmatprep.subr.mxu0 0.0
    %106 = vmatpush1.msra.mxu0 0.0
    %107 = vmatprep.subr.mxu0 0.0
    %108 = vmatpush1.msra.mxu0 0.0
    %109 = vmatprep.subr.mxu0 0.0
    %110 = vmatpush1.msra.mxu0 0.0
    %111 = vmatprep.subr.mxu0 0.0
    %112 = vmatpush1.msra.mxu0 0.0
    %113 = vmatprep.subr.mxu0 0.0
    %114 = vmatpush1.msra.mxu0 0.0
    %115 = vmatprep.subr.mxu0 0.0
    %116 = vmatpush1.msra.mxu0 0.0
    %117 = vmatprep.subr.mxu0 0.0
    %118 = vmatpush1.msra.mxu0 0.0
    %119 = vmatprep.subr.mxu0 0.0
    %120 = vmatpush1.msra.mxu0 0.0
    %121 = vmatprep.mubr.f32.mxu0 0.0
    %122 = vmatmul.mubr.f32.gmra.mrb[0].mxu0 %v55
    %v123 = vpop.f32.mrb[0].mxu0
    %v124 = vadd.f32 %v51, %v123
    %v125 = vpop.f32.mrb[0].mxu0
    %126 = vdwg.mxu0
    %v127 = vtanh.pop %v124
    %128 = vst.msk [vmem:[#allocation7] sm:$0xff] %vm53, %v127
    // Predicated region
    $region22: #{tpu_custom_call.1} parent=1 // pred_check
      _
    $region23: #{tpu_custom_call.1} parent=1 // pred_check_branch
      %130 = sbr.rel (0) target = $region25
    $region24: #{tpu_custom_call.1} parent=1 // pred_region
      %s132 = ssub.s32 128, 128
      %133 = vsyncadd [#allocation4], %s132
      %s135 = sshll.u32 [#allocation7], 4
      %s136 = int_to_ptr.vmem [resolvable:$true] %s135
      %138 = dma.vmem_to_hbm [thread:$0]  %s136, 128, %s3, [#allocation4]
    $region25: #{tpu_custom_call.1} parent=1 // pred_fallthru
      _
    // Predicated region
    $region26: #{tpu_custom_call.1} parent=1 // pred_check
      _
    $region27: #{tpu_custom_call.1} parent=1 // pred_check_branch
      %140 = sbr.rel (0) target = $region29
    $region28: #{tpu_custom_call.1} parent=1 // pred_region
      %141 = dma.done [#allocation4], 128
    $region29: #{tpu_custom_call.1} parent=1 // pred_fallthru
      _
    %142 = vsyncpa [#allocation3], 1
    %143 = vsyncpa [#allocation6], 1
    %144 = vsyncpa [#allocation4], 1

</llo_original>
